<compile_context>
chip_gen: v7x
topology: tpu7x:2x2x1
jax: 0.10.0
libtpu: 0.0.40
codegen_flags: <defaults>
</compile_context>

<pallas_src>
import jax
import jax.numpy as jnp
from jax import lax
from jax.experimental import pallas as pl
from jax.experimental.pallas import tpu as pltpu
import numpy as np

# Module hyper-parameters (from the PyTorch __init__)
NIN, NOUT = 8, 11
KH, KW = 7, 1
SH, SW = 4, 1
PH, PW = 3, 0
BN_EPS = 1e-5

CPAD = 128            # lane-dense padded output channels
KBLK = SH * NIN       # 32: features per "super-tap" block (4 H-rows x Cin)


def _round_up(x, m):
    return (x + m - 1) // m * m


def _choose_ts(nw, hq, hout, kb, cpad):
    """Sequences per grid step: big enough to amortize grid overhead, small
    enough to fit double-buffered blocks in the default scoped VMEM of any
    TPU generation (conservative 12 MiB budget)."""
    ts = min(_round_up(nw, 8), 512)
    per_seq_bytes = 2 * 4 * (hq * kb + hout * cpad)   # 2x = double buffering
    budget = 12 * 1024 * 1024
    max_ts = max(8, (budget // max(per_seq_bytes, 1)) // 8 * 8)
    return max(8, min(ts, max_ts))


def conv_bn_relu_kernel(x_ref, w0_ref, w1_ref, bias_ref, o_ref):
    """Fused strided conv (2 super-tap matmuls) + folded BN + ReLU.

    x_ref:    (HQ, TS, 32)    4-row-blocked padded input sequences
    w0_ref:   (32, CPAD)      folded weights, taps 0..3  (BN scale folded in)
    w1_ref:   (32, CPAD)      folded weights, taps 4..6  (+ one zero row)
    bias_ref: (1, CPAD)       folded BN / conv bias
    o_ref:    (HOUT, TS, CPAD)
    """
    hout = o_ref.shape[0]
    w0 = w0_ref[...]
    w1 = w1_ref[...]
    bias = bias_ref[...]

    def step(ho):
        a0 = x_ref[ho]                       # (TS, 32)  -- taps 0..3 of row ho
        a1 = x_ref[ho + 1]                   # (TS, 32)  -- taps 4..6
        y = jnp.dot(a0, w0, preferred_element_type=jnp.float32)
        y = y + jnp.dot(a1, w1, preferred_element_type=jnp.float32)
        o_ref[ho] = jnp.maximum(y + bias, 0.0).astype(o_ref.dtype)

    if hout <= 32:
        for ho in range(hout):               # static unroll for small Hout
            step(ho)
    else:
        def body(ho, carry):
            step(ho)
            return carry
        lax.fori_loop(0, hout, body, 0)


def conv2d_module_forward(x, params):
    """x: (N, Cin, H, W) NCHW float32.  Returns (N, Cout, Hout, Wout) NCHW."""
    w, b, gamma, beta, rm, rv = (
        params["w"], params["b"], params["gamma"], params["beta"],
        params["running_mean"], params["running_var"],
    )
    n, cin, h, wdim = x.shape
    assert cin == NIN and KH <= 2 * SH and KW == 1 and SW == 1 and PW == 0
    hout = (h + 2 * PH - KH) // SH + 1
    wout = wdim  # KW=1, SW=1, PW=0

    # ---- fold eval-mode BatchNorm (+ conv bias) into weights / bias ----------
    scale = gamma * lax.rsqrt(rv + BN_EPS)                # (Cout,)
    bias_f = beta + (b - rm) * scale                      # (Cout,)
    w_f = w[:, :, :, 0] * scale[:, None, None]            # (Cout, Cin, KH)

    # Decompose the KH=7 / stride-4 conv into two 32-wide "super-tap" matmuls.
    w_sk = jnp.transpose(w_f, (2, 1, 0))                  # (KH, Cin, Cout)
    w0 = w_sk[:SH].reshape(KBLK, NOUT)                    # taps 0..3
    w1 = jnp.concatenate(
        [w_sk[SH:], jnp.zeros((2 * SH - KH, NIN, NOUT), w_sk.dtype)], axis=0
    ).reshape(KBLK, NOUT)                                 # taps 4..6 (+ zero row)
    # lane-dense: pad Cout 11 -> 128 (zero columns => zero outputs, sliced off)
    w0p = jnp.pad(w0, ((0, 0), (0, CPAD - NOUT))).astype(jnp.float32)
    w1p = jnp.pad(w1, ((0, 0), (0, CPAD - NOUT))).astype(jnp.float32)
    biasp = jnp.pad(bias_f[None, :], ((0, 0), (0, CPAD - NOUT))).astype(jnp.float32)

    # ---- layout: NCHW -> (Hq, N*W, SH*Cin), H padded and blocked by stride ---
    nw = n * wdim
    hq = max(_round_up(h + 2 * PH, SH) // SH, hout + 1)
    hp = hq * SH
    x_p = jnp.pad(x.astype(jnp.float32),
                  ((0, 0), (0, 0), (PH, hp - h - PH), (0, 0)))
    x_b = (x_p.reshape(n, NIN, hq, SH, wdim)
              .transpose(2, 0, 4, 3, 1)                   # (Hq, N, W, SH, Cin)
              .reshape(hq, nw, KBLK))

    ts = _choose_ts(nw, hq, hout, KBLK, CPAD)
    nwp = _round_up(nw, ts)
    if nwp != nw:
        x_b = jnp.pad(x_b, ((0, 0), (0, nwp - nw), (0, 0)))

    out = pl.pallas_call(
        conv_bn_relu_kernel,
        out_shape=jax.ShapeDtypeStruct((hout, nwp, CPAD), jnp.float32),
        grid=(nwp // ts,),
        in_specs=[
            pl.BlockSpec((hq, ts, KBLK), lambda i: (0, i, 0)),
            pl.BlockSpec((KBLK, CPAD), lambda i: (0, 0)),
            pl.BlockSpec((KBLK, CPAD), lambda i: (0, 0)),
            pl.BlockSpec((1, CPAD), lambda i: (0, 0)),
        ],
        out_specs=pl.BlockSpec((hout, ts, CPAD), lambda i: (0, i, 0)),
        compiler_params=pltpu.CompilerParams(
            dimension_semantics=("parallel",),
        ),
    )(x_b, w0p, w1p, biasp)

    # (Hout, N*W, CPAD) -> NCHW (drop padded lanes / padded sequences).
    # Note: a fused downstream consumer could take the lane-dense
    # (Hout, N*W, 128) output directly and skip this transpose.
    out = out[:, :nw, :NOUT].reshape(hout, n, wdim, NOUT)
    return jnp.transpose(out, (1, 3, 0, 2))               # (N, Cout, Hout, W)


def reference_forward(x, params):
    """Pure-JAX reference (lax conv + eval BN + ReLU)."""
    y = lax.conv_general_dilated(
        x, params["w"],
        window_strides=(SH, SW),
        padding=((PH, PH), (PW, PW)),
        dimension_numbers=("NCHW", "OIHW", "NCHW"),
    ) + params["b"].reshape(1, NOUT, 1, 1)
    scale = params["gamma"] / jnp.sqrt(params["running_var"] + BN_EPS)
    y = (y - params["running_mean"].reshape(1, NOUT, 1, 1)) * scale.reshape(1, NOUT, 1, 1) \
        + params["beta"].reshape(1, NOUT, 1, 1)
    return jnp.maximum(y, 0.0)


def init_params(key):
    k_w, k_b, k_g, k_be, k_m, k_v = jax.random.split(key, 6)
    fan_in = NIN * KH * KW
    bound = 1.0 / np.sqrt(fan_in)
    return {
        "w": jax.random.uniform(k_w, (NOUT, NIN, KH, KW), jnp.float32, -bound, bound),
        "b": jax.random.uniform(k_b, (NOUT,), jnp.float32, -bound, bound),
        "gamma": jax.random.uniform(k_g, (NOUT,), jnp.float32, 0.5, 1.5),
        "beta": jax.random.normal(k_be, (NOUT,), jnp.float32) * 0.1,
        "running_mean": jax.random.normal(k_m, (NOUT,), jnp.float32) * 0.1,
        "running_var": jax.random.uniform(k_v, (NOUT,), jnp.float32, 0.5, 1.5),
    }


if __name__ == "__main__":
    key = jax.random.PRNGKey(0)
    k_x, k_p = jax.random.split(key)

    # Small NCHW input consistent with the module: (batch=2, nin=8, H=16, W=8)
    x = jax.random.normal(k_x, (2, NIN, 16, 8), jnp.float32)
    params = init_params(k_p)

    out = jax.block_until_ready(conv2d_module_forward(x, params))
    ref = jax.block_until_ready(reference_forward(x, params))

    assert out.shape == ref.shape == (2, NOUT, 4, 8), out.shape
    np.testing.assert_allclose(np.asarray(out), np.asarray(ref), rtol=1e-4, atol=1e-4)

    print("KERNEL_OK")
</pallas_src>

<mosaic_0001>
module attributes {stable_mosaic.version = 11 : i64} {
  func.func @conv_bn_relu_kernel(%arg0: i32, %arg1: memref<6x16x32xf32, #tpu.memory_space<vmem>>, %arg2: memref<32x128xf32, #tpu.memory_space<vmem>>, %arg3: memref<32x128xf32, #tpu.memory_space<vmem>>, %arg4: memref<1x128xf32, #tpu.memory_space<vmem>>, %arg5: memref<4x16x128xf32, #tpu.memory_space<vmem>>) attributes {dimension_semantics = [#tpu.dimension_semantics<parallel>], iteration_bounds = array<i64: 1>, scalar_prefetch = 0 : i64, scratch_operands = 0 : i64, tpu.core_type = #tpu.core_type<tc>, window_params = [{transform_indices = @transform_0, window_bounds = array<i64: 6, 16, 32>}, {pipeline_mode = #tpu.pipeline_mode<synchronous>, transform_indices = @transform_1, window_bounds = array<i64: 32, 128>}, {pipeline_mode = #tpu.pipeline_mode<synchronous>, transform_indices = @transform_2, window_bounds = array<i64: 32, 128>}, {pipeline_mode = #tpu.pipeline_mode<synchronous>, transform_indices = @transform_3, window_bounds = array<i64: 1, 128>}, {transform_indices = @transform_4, window_bounds = array<i64: 4, 16, 128>}]} {
    %c0 = arith.constant 0 : index
    %c0_0 = arith.constant 0 : index
    %0 = vector.load %arg2[%c0, %c0_0] : memref<32x128xf32, #tpu.memory_space<vmem>>, vector<32x128xf32>
    %c0_1 = arith.constant 0 : index
    %c0_2 = arith.constant 0 : index
    %1 = vector.load %arg3[%c0_1, %c0_2] : memref<32x128xf32, #tpu.memory_space<vmem>>, vector<32x128xf32>
    %c0_3 = arith.constant 0 : index
    %c0_4 = arith.constant 0 : index
    %2 = vector.load %arg4[%c0_3, %c0_4] : memref<1x128xf32, #tpu.memory_space<vmem>>, vector<1x128xf32>
    %c0_5 = arith.constant 0 : index
    %c0_6 = arith.constant 0 : index
    %c0_7 = arith.constant 0 : index
    %3 = vector.load %arg1[%c0_5, %c0_6, %c0_7] : memref<6x16x32xf32, #tpu.memory_space<vmem>>, vector<1x16x32xf32>
    %4 = vector.shape_cast %3 : vector<1x16x32xf32> to vector<16x32xf32>
    %c1 = arith.constant 1 : index
    %c0_8 = arith.constant 0 : index
    %c0_9 = arith.constant 0 : index
    %5 = vector.load %arg1[%c1, %c0_8, %c0_9] : memref<6x16x32xf32, #tpu.memory_space<vmem>>, vector<1x16x32xf32>
    %6 = vector.shape_cast %5 : vector<1x16x32xf32> to vector<16x32xf32>
    %cst = arith.constant dense<0.000000e+00> : vector<16x128xf32>
    %7 = tpu.matmul %4, %0, %cst {dimension_numbers = #tpu.dot_dimension_numbers<[1], [0], [0], [1], [0, 0, 1, 1], [], []>} : vector<16x32xf32>, vector<32x128xf32>, vector<16x128xf32> -> vector<16x128xf32>
    %cst_10 = arith.constant dense<0.000000e+00> : vector<16x128xf32>
    %8 = tpu.matmul %6, %1, %cst_10 {dimension_numbers = #tpu.dot_dimension_numbers<[1], [0], [0], [1], [0, 0, 1, 1], [], []>} : vector<16x32xf32>, vector<32x128xf32>, vector<16x128xf32> -> vector<16x128xf32>
    %9 = arith.addf %7, %8 : vector<16x128xf32>
    %10 = vector.broadcast %2 : vector<1x128xf32> to vector<16x128xf32>
    %11 = arith.addf %9, %10 : vector<16x128xf32>
    %cst_11 = arith.constant 0.000000e+00 : f32
    %12 = vector.broadcast %cst_11 : f32 to vector<16x128xf32>
    %13 = arith.maximumf %11, %12 : vector<16x128xf32>
    %c0_12 = arith.constant 0 : index
    %c0_13 = arith.constant 0 : index
    %c0_14 = arith.constant 0 : index
    %14 = vector.load %arg5[%c0_12, %c0_13, %c0_14] : memref<4x16x128xf32, #tpu.memory_space<vmem>>, vector<1x16x128xf32>
    %15 = vector.shape_cast %14 : vector<1x16x128xf32> to vector<16x128xf32>
    %16 = vector.shape_cast %13 : vector<16x128xf32> to vector<1x16x128xf32>
    tpu.vector_store %arg5[%c0_12, %c0_13, %c0_14], %16 {strides = array<i32>} : memref<4x16x128xf32, #tpu.memory_space<vmem>>, vector<1x16x128xf32>,
    %c1_15 = arith.constant 1 : index
    %c0_16 = arith.constant 0 : index
    %c0_17 = arith.constant 0 : index
    %17 = vector.load %arg1[%c1_15, %c0_16, %c0_17] : memref<6x16x32xf32, #tpu.memory_space<vmem>>, vector<1x16x32xf32>
    %18 = vector.shape_cast %17 : vector<1x16x32xf32> to vector<16x32xf32>
    %c2 = arith.constant 2 : index
    %c0_18 = arith.constant 0 : index
    %c0_19 = arith.constant 0 : index
    %19 = vector.load %arg1[%c2, %c0_18, %c0_19] : memref<6x16x32xf32, #tpu.memory_space<vmem>>, vector<1x16x32xf32>
    %20 = vector.shape_cast %19 : vector<1x16x32xf32> to vector<16x32xf32>
    %cst_20 = arith.constant dense<0.000000e+00> : vector<16x128xf32>
    %21 = tpu.matmul %18, %0, %cst_20 {dimension_numbers = #tpu.dot_dimension_numbers<[1], [0], [0], [1], [0, 0, 1, 1], [], []>} : vector<16x32xf32>, vector<32x128xf32>, vector<16x128xf32> -> vector<16x128xf32>
    %cst_21 = arith.constant dense<0.000000e+00> : vector<16x128xf32>
    %22 = tpu.matmul %20, %1, %cst_21 {dimension_numbers = #tpu.dot_dimension_numbers<[1], [0], [0], [1], [0, 0, 1, 1], [], []>} : vector<16x32xf32>, vector<32x128xf32>, vector<16x128xf32> -> vector<16x128xf32>
    %23 = arith.addf %21, %22 : vector<16x128xf32>
    %24 = vector.broadcast %2 : vector<1x128xf32> to vector<16x128xf32>
    %25 = arith.addf %23, %24 : vector<16x128xf32>
    %cst_22 = arith.constant 0.000000e+00 : f32
    %26 = vector.broadcast %cst_22 : f32 to vector<16x128xf32>
    %27 = arith.maximumf %25, %26 : vector<16x128xf32>
    %c1_23 = arith.constant 1 : index
    %c0_24 = arith.constant 0 : index
    %c0_25 = arith.constant 0 : index
    %28 = vector.load %arg5[%c1_23, %c0_24, %c0_25] : memref<4x16x128xf32, #tpu.memory_space<vmem>>, vector<1x16x128xf32>
    %29 = vector.shape_cast %28 : vector<1x16x128xf32> to vector<16x128xf32>
    %30 = vector.shape_cast %27 : vector<16x128xf32> to vector<1x16x128xf32>
    tpu.vector_store %arg5[%c1_23, %c0_24, %c0_25], %30 {strides = array<i32>} : memref<4x16x128xf32, #tpu.memory_space<vmem>>, vector<1x16x128xf32>,
    %c2_26 = arith.constant 2 : index
    %c0_27 = arith.constant 0 : index
    %c0_28 = arith.constant 0 : index
    %31 = vector.load %arg1[%c2_26, %c0_27, %c0_28] : memref<6x16x32xf32, #tpu.memory_space<vmem>>, vector<1x16x32xf32>
    %32 = vector.shape_cast %31 : vector<1x16x32xf32> to vector<16x32xf32>
    %c3 = arith.constant 3 : index
    %c0_29 = arith.constant 0 : index
    %c0_30 = arith.constant 0 : index
    %33 = vector.load %arg1[%c3, %c0_29, %c0_30] : memref<6x16x32xf32, #tpu.memory_space<vmem>>, vector<1x16x32xf32>
    %34 = vector.shape_cast %33 : vector<1x16x32xf32> to vector<16x32xf32>
    %cst_31 = arith.constant dense<0.000000e+00> : vector<16x128xf32>
    %35 = tpu.matmul %32, %0, %cst_31 {dimension_numbers = #tpu.dot_dimension_numbers<[1], [0], [0], [1], [0, 0, 1, 1], [], []>} : vector<16x32xf32>, vector<32x128xf32>, vector<16x128xf32> -> vector<16x128xf32>
    %cst_32 = arith.constant dense<0.000000e+00> : vector<16x128xf32>
    %36 = tpu.matmul %34, %1, %cst_32 {dimension_numbers = #tpu.dot_dimension_numbers<[1], [0], [0], [1], [0, 0, 1, 1], [], []>} : vector<16x32xf32>, vector<32x128xf32>, vector<16x128xf32> -> vector<16x128xf32>
    %37 = arith.addf %35, %36 : vector<16x128xf32>
    %38 = vector.broadcast %2 : vector<1x128xf32> to vector<16x128xf32>
    %39 = arith.addf %37, %38 : vector<16x128xf32>
    %cst_33 = arith.constant 0.000000e+00 : f32
    %40 = vector.broadcast %cst_33 : f32 to vector<16x128xf32>
    %41 = arith.maximumf %39, %40 : vector<16x128xf32>
    %c2_34 = arith.constant 2 : index
    %c0_35 = arith.constant 0 : index
    %c0_36 = arith.constant 0 : index
    %42 = vector.load %arg5[%c2_34, %c0_35, %c0_36] : memref<4x16x128xf32, #tpu.memory_space<vmem>>, vector<1x16x128xf32>
    %43 = vector.shape_cast %42 : vector<1x16x128xf32> to vector<16x128xf32>
    %44 = vector.shape_cast %41 : vector<16x128xf32> to vector<1x16x128xf32>
    tpu.vector_store %arg5[%c2_34, %c0_35, %c0_36], %44 {strides = array<i32>} : memref<4x16x128xf32, #tpu.memory_space<vmem>>, vector<1x16x128xf32>,
    %c3_37 = arith.constant 3 : index
    %c0_38 = arith.constant 0 : index
    %c0_39 = arith.constant 0 : index
    %45 = vector.load %arg1[%c3_37, %c0_38, %c0_39] : memref<6x16x32xf32, #tpu.memory_space<vmem>>, vector<1x16x32xf32>
    %46 = vector.shape_cast %45 : vector<1x16x32xf32> to vector<16x32xf32>
    %c4 = arith.constant 4 : index
    %c0_40 = arith.constant 0 : index
    %c0_41 = arith.constant 0 : index
    %47 = vector.load %arg1[%c4, %c0_40, %c0_41] : memref<6x16x32xf32, #tpu.memory_space<vmem>>, vector<1x16x32xf32>
    %48 = vector.shape_cast %47 : vector<1x16x32xf32> to vector<16x32xf32>
    %cst_42 = arith.constant dense<0.000000e+00> : vector<16x128xf32>
    %49 = tpu.matmul %46, %0, %cst_42 {dimension_numbers = #tpu.dot_dimension_numbers<[1], [0], [0], [1], [0, 0, 1, 1], [], []>} : vector<16x32xf32>, vector<32x128xf32>, vector<16x128xf32> -> vector<16x128xf32>
    %cst_43 = arith.constant dense<0.000000e+00> : vector<16x128xf32>
    %50 = tpu.matmul %48, %1, %cst_43 {dimension_numbers = #tpu.dot_dimension_numbers<[1], [0], [0], [1], [0, 0, 1, 1], [], []>} : vector<16x32xf32>, vector<32x128xf32>, vector<16x128xf32> -> vector<16x128xf32>
    %51 = arith.addf %49, %50 : vector<16x128xf32>
    %52 = vector.broadcast %2 : vector<1x128xf32> to vector<16x128xf32>
    %53 = arith.addf %51, %52 : vector<16x128xf32>
    %cst_44 = arith.constant 0.000000e+00 : f32
    %54 = vector.broadcast %cst_44 : f32 to vector<16x128xf32>
    %55 = arith.maximumf %53, %54 : vector<16x128xf32>
    %c3_45 = arith.constant 3 : index
    %c0_46 = arith.constant 0 : index
    %c0_47 = arith.constant 0 : index
    %56 = vector.load %arg5[%c3_45, %c0_46, %c0_47] : memref<4x16x128xf32, #tpu.memory_space<vmem>>, vector<1x16x128xf32>
    %57 = vector.shape_cast %56 : vector<1x16x128xf32> to vector<16x128xf32>
    %58 = vector.shape_cast %55 : vector<16x128xf32> to vector<1x16x128xf32>
    tpu.vector_store %arg5[%c3_45, %c0_46, %c0_47], %58 {strides = array<i32>} : memref<4x16x128xf32, #tpu.memory_space<vmem>>, vector<1x16x128xf32>,
    return
  }
  func.func @transform_0(%arg0: i32) -> (i32, i32, i32) {
    %c0_i32 = arith.constant 0 : i32
    %c0_i32_0 = arith.constant 0 : i32
    %c0_i32_1 = arith.constant 0 : i32
    return %c0_i32, %arg0, %c0_i32_0 : i32, i32, i32
  }
  func.func @transform_1(%arg0: i32) -> (i32, i32) {
    %c0_i32 = arith.constant 0 : i32
    %c0_i32_0 = arith.constant 0 : i32
    %c0_i32_1 = arith.constant 0 : i32
    return %c0_i32, %c0_i32_0 : i32, i32
  }
  func.func @transform_2(%arg0: i32) -> (i32, i32) {
    %c0_i32 = arith.constant 0 : i32
    %c0_i32_0 = arith.constant 0 : i32
    %c0_i32_1 = arith.constant 0 : i32
    return %c0_i32, %c0_i32_0 : i32, i32
  }
  func.func @transform_3(%arg0: i32) -> (i32, i32) {
    %c0_i32 = arith.constant 0 : i32
    %c0_i32_0 = arith.constant 0 : i32
    %c0_i32_1 = arith.constant 0 : i32
    return %c0_i32, %c0_i32_0 : i32, i32
  }
  func.func @transform_4(%arg0: i32) -> (i32, i32, i32) {
    %c0_i32 = arith.constant 0 : i32
    %c0_i32_0 = arith.constant 0 : i32
    %c0_i32_1 = arith.constant 0 : i32
    return %c0_i32, %arg0, %c0_i32_0 : i32, i32, i32
  }
}

</mosaic_0001>

<llo_original>
// kernel: tpu_custom_call.1
$region0: #{tpu_custom_call.1}
  #allocation0 [shape = 'u32[]', space=smem, size = 0x4, offset = 0x4, fixed_abs, tag = 'smem constant byte address 0x4 - core index']
  #allocation1 [shape = 'u32[144,128]{1,0:T(1,128)}', space=vmem, size = 0x12000, scoped, tag = 'internal scratch']
  %s0 = inlined_call_operand.hbm [shape: f32[6,16,32], index: 0, kind: input, shape index: {}]
  %s1 = inlined_call_operand.hbm [shape: f32[32,128], index: 1, kind: input, shape index: {}]
  %s2 = inlined_call_operand.hbm [shape: f32[32,128], index: 2, kind: input, shape index: {}]
  %s3 = inlined_call_operand.vmem [shape: f32[1,128], index: 3, kind: input, shape index: {}]
  %s4 = inlined_call_operand.hbm [shape: f32[4,16,128], index: 4, kind: output, shape index: {}]
  %s5 = sld [smem:[#allocation0]]
  $region38: #{tpu_custom_call.1} parent=0
    _
  %s7 = ssub.s32 1, %s5
  %s8 = scalar_select 0, %s7, %s5
  $region1: #{tpu_custom_call.1} parent=0
    #allocation2 [shape = 'u8[49152]{0}', space=vmem, size = 0xc000, scoped, tag = 'input window, operand 0, single buffered']
    #allocation3 [shape = 's32[1]{0}', space=sflag, size = 0x4, scoped, tag = 'scoped memory for tpu_custom_call.1']
    #allocation4 [shape = 's32[1]{0}', space=sflag, size = 0x4, scoped, tag = 'scoped memory for tpu_custom_call.1']
    #allocation5 [shape = 'u8[16384]{0}', space=vmem, size = 0x4000, scoped, tag = 'input window, operand 1, single buffered']
    #allocation6 [shape = 's32[1]{0}', space=sflag, size = 0x4, scoped, tag = 'scoped memory for tpu_custom_call.1']
    #allocation7 [shape = 'u8[16384]{0}', space=vmem, size = 0x4000, scoped, tag = 'input window, operand 2, single buffered']
    #allocation8 [shape = 'u8[32768]{0}', space=vmem, size = 0x8000, scoped, tag = 'output window, operand 0, single buffered']
    %9 = vsyncpa [#allocation3], 0
    %10 = vsyncpa [#allocation6], 0
    %11 = vsyncpa [#allocation4], 0
    // Predicated region
    $region2: #{tpu_custom_call.1} parent=1 // pred_check
      _
    $region3: #{tpu_custom_call.1} parent=1 // pred_check_branch
      %13 = sbr.rel (0) target = $region5
    $region4: #{tpu_custom_call.1} parent=1 // pred_region
      %s15 = ssub.s32 1536, 1536
      %16 = vsyncadd [#allocation3], %s15
      %s17 = sshll.u32 [#allocation2], 4
      %s18 = int_to_ptr.vmem [resolvable:$true] %s17
      %23 = dma.hbm_to_vmem [thread:$0]  %s0, 1536, %s18, [#allocation3], 128, 128, 8
    $region5: #{tpu_custom_call.1} parent=1 // pred_fallthru
      _
    // Predicated region
    $region6: #{tpu_custom_call.1} parent=1 // pred_check
      _
    $region7: #{tpu_custom_call.1} parent=1 // pred_check_branch
      %25 = sbr.rel (0) target = $region9
    $region8: #{tpu_custom_call.1} parent=1 // pred_region
      %s27 = ssub.s32 512, 512
      %28 = vsyncadd [#allocation6], %s27
      %s29 = sshll.u32 [#allocation5], 4
      %s30 = int_to_ptr.vmem [resolvable:$true] %s29
      %35 = dma.hbm_to_vmem [thread:$0]  %s1, 512, %s30, [#allocation6], 128, 128, 8
    $region9: #{tpu_custom_call.1} parent=1 // pred_fallthru
      _
    // Predicated region
    $region10: #{tpu_custom_call.1} parent=1 // pred_check
      _
    $region11: #{tpu_custom_call.1} parent=1 // pred_check_branch
      %37 = sbr.rel (0) target = $region13
    $region12: #{tpu_custom_call.1} parent=1 // pred_region
      %s39 = ssub.s32 512, 512
      %40 = vsyncadd [#allocation6], %s39
      %s41 = sshll.u32 [#allocation7], 4
      %s42 = int_to_ptr.vmem [resolvable:$true] %s41
      %47 = dma.hbm_to_vmem [thread:$0]  %s2, 512, %s42, [#allocation6], 128, 128, 8
    $region13: #{tpu_custom_call.1} parent=1 // pred_fallthru
      _
    // Predicated region
    $region14: #{tpu_custom_call.1} parent=1 // pred_check
      _
    $region15: #{tpu_custom_call.1} parent=1 // pred_check_branch
      %49 = sbr.rel (0) target = $region17
    $region16: #{tpu_custom_call.1} parent=1 // pred_region
      _
    $region17: #{tpu_custom_call.1} parent=1 // pred_fallthru
      _
    // Predicated region
    $region18: #{tpu_custom_call.1} parent=1 // pred_check
      _
    $region19: #{tpu_custom_call.1} parent=1 // pred_check_branch
      %51 = sbr.rel (0) target = $region21
    $region20: #{tpu_custom_call.1} parent=1 // pred_region
      %52 = dma.done [#allocation3], 1536
    $region21: #{tpu_custom_call.1} parent=1 // pred_fallthru
      _
    // Predicated region
    $region22: #{tpu_custom_call.1} parent=1 // pred_check
      _
    $region23: #{tpu_custom_call.1} parent=1 // pred_check_branch
      %54 = sbr.rel (0) target = $region25
    $region24: #{tpu_custom_call.1} parent=1 // pred_region
      %55 = dma.done [#allocation6], 512
    $region25: #{tpu_custom_call.1} parent=1 // pred_fallthru
      _
    // Predicated region
    $region26: #{tpu_custom_call.1} parent=1 // pred_check
      _
    $region27: #{tpu_custom_call.1} parent=1 // pred_check_branch
      %57 = sbr.rel (0) target = $region29
    $region28: #{tpu_custom_call.1} parent=1 // pred_region
      %58 = dma.done [#allocation6], 512
    $region29: #{tpu_custom_call.1} parent=1 // pred_fallthru
      _
    %v59 = vld [vmem:[#allocation5] sm:$0xff]
    %v60 = vld [vmem:[#allocation5 + $0x8] sm:$0xff]
    %v61 = vld [vmem:[#allocation5 + $0x10] sm:$0xff]
    %v62 = vld [vmem:[#allocation5 + $0x18] sm:$0xff]
    %v63 = vld [vmem:[#allocation7] sm:$0xff]
    %v64 = vld [vmem:[#allocation7 + $0x8] sm:$0xff]
    %v65 = vld [vmem:[#allocation7 + $0x10] sm:$0xff]
    %v66 = vld [vmem:[#allocation7 + $0x18] sm:$0xff]
    %v67 = vld [vmem:[%s3] sm:$0x1]
    %v68 = vld [vmem:[#allocation2] sm:$0xff]
    %v69 = vld [vmem:[#allocation2 + $0x8] sm:$0xff]
    %s70 = scalar_lea.vmem [#allocation2], 16
    %v71 = vld [vmem:[%s70] sm:$0xff]
    %v72 = vld [vmem:[%s70 + $0x8] sm:$0xff]
    %vm73 = vcmask 261120
    %v75 = vsel %vm73, %v71, 0
    %v78 = vsel %vm73, %v72, 0
    %80 = vmatprep.subr.mxu0 0.0
    %81 = vmatpush1.msra.mxu0 %v63
    %82 = vmatprep.subr.mxu0 0.0
    %83 = vmatpush1.msra.mxu0 %v64
    %84 = vmatprep.subr.mxu0 0.0
    %85 = vmatpush1.msra.mxu0 %v65
    %86 = vmatprep.subr.mxu0 0.0
    %87 = vmatpush1.msra.mxu0 %v66
    %88 = vmatprep.subr.mxu0 0.0
    %89 = vmatpush1.msra.mxu0 0.0
    %90 = vmatprep.subr.mxu0 0.0
    %91 = vmatpush1.msra.mxu0 0.0
    %92 = vmatprep.subr.mxu0 0.0
    %93 = vmatpush1.msra.mxu0 0.0
    %94 = vmatprep.subr.mxu0 0.0
    %95 = vmatpush1.msra.mxu0 0.0
    %96 = vmatprep.subr.mxu0 0.0
    %97 = vmatpush1.msra.mxu0 0.0
    %98 = vmatprep.subr.mxu0 0.0
    %99 = vmatpush1.msra.mxu0 0.0
    %100 = vmatprep.subr.mxu0 0.0
    %101 = vmatpush1.msra.mxu0 0.0
    %102 = vmatprep.subr.mxu0 0.0
    %103 = vmatpush1.msra.mxu0 0.0
    %104 = vmatprep.subr.mxu0 0.0
    %105 = vmatpush1.msra.mxu0 0.0
    %106 = vmatprep.subr.mxu0 0.0
    %107 = vmatpush1.msra.mxu0 0.0
    %108 = vmatprep.subr.mxu0 0.0
    %109 = vmatpush1.msra.mxu0 0.0
    %110 = vmatprep.subr.mxu0 0.0
    %111 = vmatpush1.msra.mxu0 0.0
    %112 = vmatprep.subr.mxu0 0.0
    %113 = vmatpush1.msra.mxu0 0.0
    %114 = vmatprep.subr.mxu0 0.0
    %115 = vmatpush1.msra.mxu0 0.0
    %116 = vmatprep.subr.mxu0 0.0
    %117 = vmatpush1.msra.mxu0 0.0
    %118 = vmatprep.subr.mxu0 0.0
    %119 = vmatpush1.msra.mxu0 0.0
    %120 = vmatprep.subr.mxu0 0.0
    %121 = vmatpush1.msra.mxu0 0.0
    %122 = vmatprep.subr.mxu0 0.0
    %123 = vmatpush1.msra.mxu0 0.0
    %124 = vmatprep.subr.mxu0 0.0
    %125 = vmatpush1.msra.mxu0 0.0
    %126 = vmatprep.subr.mxu0 0.0
    %127 = vmatpush1.msra.mxu0 0.0
    %128 = vmatprep.subr.mxu0 0.0
    %129 = vmatpush1.msra.mxu0 0.0
    %130 = vmatprep.subr.mxu0 0.0
    %131 = vmatpush1.msra.mxu0 0.0
    %132 = vmatprep.subr.mxu0 0.0
    %133 = vmatpush1.msra.mxu0 0.0
    %134 = vmatprep.subr.mxu0 0.0
    %135 = vmatpush1.msra.mxu0 0.0
    %136 = vmatprep.subr.mxu0 0.0
    %137 = vmatpush1.msra.mxu0 0.0
    %138 = vmatprep.subr.mxu0 0.0
    %139 = vmatpush1.msra.mxu0 0.0
    %140 = vmatprep.subr.mxu0 0.0
    %141 = vmatpush1.msra.mxu0 0.0
    %142 = vmatprep.subr.mxu0 0.0
    %143 = vmatpush1.msra.mxu0 0.0
    %144 = vmatprep.mubr.f32.mxu0 0.0
    %145 = vmatmul.mubr.f32.gmra.mrb[0].mxu0 %v75
    %v146 = vpop.f32.mrb[0].mxu0
    %v147 = vadd.f32 0.0, %v146
    %v148 = vpop.f32.mrb[0].mxu0
    %149 = vmatprep.mubr.f32.mxu0 0.0
    %150 = vmatmul.mubr.f32.gmra.mrb[0].mxu0 %v78
    %v151 = vpop.f32.mrb[0].mxu0
    %v152 = vadd.f32 0.0, %v151
    %v153 = vpop.f32.mrb[0].mxu0
    %154 = vdwg.mxu0
    %v156 = vsel %vm73, %v68, 0
    %v159 = vsel %vm73, %v69, 0
    %161 = vmatprep.subr.mxu0 0.0
    %162 = vmatpush1.msra.mxu0 %v59
    %163 = vmatprep.subr.mxu0 0.0
    %164 = vmatpush1.msra.mxu0 %v60
    %165 = vmatprep.subr.mxu0 0.0
    %166 = vmatpush1.msra.mxu0 %v61
    %167 = vmatprep.subr.mxu0 0.0
    %168 = vmatpush1.msra.mxu0 %v62
    %169 = vmatprep.subr.mxu0 0.0
    %170 = vmatpush1.msra.mxu0 0.0
    %171 = vmatprep.subr.mxu0 0.0
    %172 = vmatpush1.msra.mxu0 0.0
    %173 = vmatprep.subr.mxu0 0.0
    %174 = vmatpush1.msra.mxu0 0.0
    %175 = vmatprep.subr.mxu0 0.0
    %176 = vmatpush1.msra.mxu0 0.0
    %177 = vmatprep.subr.mxu0 0.0
    %178 = vmatpush1.msra.mxu0 0.0
    %179 = vmatprep.subr.mxu0 0.0
    %180 = vmatpush1.msra.mxu0 0.0
    %181 = vmatprep.subr.mxu0 0.0
    %182 = vmatpush1.msra.mxu0 0.0
    %183 = vmatprep.subr.mxu0 0.0
    %184 = vmatpush1.msra.mxu0 0.0
    %185 = vmatprep.subr.mxu0 0.0
    %186 = vmatpush1.msra.mxu0 0.0
    %187 = vmatprep.subr.mxu0 0.0
    %188 = vmatpush1.msra.mxu0 0.0
    %189 = vmatprep.subr.mxu0 0.0
    %190 = vmatpush1.msra.mxu0 0.0
    %191 = vmatprep.subr.mxu0 0.0
    %192 = vmatpush1.msra.mxu0 0.0
    %193 = vmatprep.subr.mxu0 0.0
    %194 = vmatpush1.msra.mxu0 0.0
    %195 = vmatprep.subr.mxu0 0.0
    %196 = vmatpush1.msra.mxu0 0.0
    %197 = vmatprep.subr.mxu0 0.0
    %198 = vmatpush1.msra.mxu0 0.0
    %199 = vmatprep.subr.mxu0 0.0
    %200 = vmatpush1.msra.mxu0 0.0
    %201 = vmatprep.subr.mxu0 0.0
    %202 = vmatpush1.msra.mxu0 0.0
    %203 = vmatprep.subr.mxu0 0.0
    %204 = vmatpush1.msra.mxu0 0.0
    %205 = vmatprep.subr.mxu0 0.0
    %206 = vmatpush1.msra.mxu0 0.0
    %207 = vmatprep.subr.mxu0 0.0
    %208 = vmatpush1.msra.mxu0 0.0
    %209 = vmatprep.subr.mxu0 0.0
    %210 = vmatpush1.msra.mxu0 0.0
    %211 = vmatprep.subr.mxu0 0.0
    %212 = vmatpush1.msra.mxu0 0.0
    %213 = vmatprep.subr.mxu0 0.0
    %214 = vmatpush1.msra.mxu0 0.0
    %215 = vmatprep.subr.mxu0 0.0
    %216 = vmatpush1.msra.mxu0 0.0
    %217 = vmatprep.subr.mxu0 0.0
    %218 = vmatpush1.msra.mxu0 0.0
    %219 = vmatprep.subr.mxu0 0.0
    %220 = vmatpush1.msra.mxu0 0.0
    %221 = vmatprep.subr.mxu0 0.0
    %222 = vmatpush1.msra.mxu0 0.0
    %223 = vmatprep.subr.mxu0 0.0
    %224 = vmatpush1.msra.mxu0 0.0
    %225 = vmatprep.mubr.f32.mxu0 0.0
    %226 = vmatmul.mubr.f32.gmra.mrb[0].mxu0 %v156
    %v227 = vpop.f32.mrb[0].mxu0
    %v228 = vadd.f32 %v147, %v227
    %v229 = vpop.f32.mrb[0].mxu0
    %230 = vmatprep.mubr.f32.mxu0 0.0
    %231 = vmatmul.mubr.f32.gmra.mrb[0].mxu0 %v159
    %v232 = vpop.f32.mrb[0].mxu0
    %v233 = vadd.f32 %v152, %v232
    %v234 = vpop.f32.mrb[0].mxu0
    %235 = vdwg.mxu0
    %v237 = vlaneseq
    %v238 = vshrl.u32 %v237, 7
    %v239 = vsub.s32 0, %v238
    %v240 = vrot.slane %v67, %v239
    %v242 = vadd.f32 %v228, %v240
    %v243 = vadd.f32 %v233, %v240
    %v244 = vmax.f32 %v242, 0.0
    %v245 = vmax.f32 %v243, 0.0
    %246 = vst [vmem:[#allocation8] sm:$0xff] %v244
    %247 = vst [vmem:[#allocation8 + $0x8] sm:$0xff] %v245
    %v248 = vld [vmem:[%s70] sm:$0xff]
    %v249 = vld [vmem:[%s70 + $0x8] sm:$0xff]
    %s250 = scalar_lea.vmem [#allocation2], 32
    %v251 = vld [vmem:[%s250] sm:$0xff]
    %v252 = vld [vmem:[%s250 + $0x8] sm:$0xff]
    %v254 = vsel %vm73, %v251, 0
    %v257 = vsel %vm73, %v252, 0
    %259 = vmatprep.subr.mxu0 0.0
    %260 = vmatpush1.msra.mxu0 %v63
    %261 = vmatprep.subr.mxu0 0.0
    %262 = vmatpush1.msra.mxu0 %v64
    %263 = vmatprep.subr.mxu0 0.0
    %264 = vmatpush1.msra.mxu0 %v65
    %265 = vmatprep.subr.mxu0 0.0
    %266 = vmatpush1.msra.mxu0 %v66
    %267 = vmatprep.subr.mxu0 0.0
    %268 = vmatpush1.msra.mxu0 0.0
    %269 = vmatprep.subr.mxu0 0.0
    %270 = vmatpush1.msra.mxu0 0.0
    %271 = vmatprep.subr.mxu0 0.0
    %272 = vmatpush1.msra.mxu0 0.0
    %273 = vmatprep.subr.mxu0 0.0
    %274 = vmatpush1.msra.mxu0 0.0
    %275 = vmatprep.subr.mxu0 0.0
    %276 = vmatpush1.msra.mxu0 0.0
    %277 = vmatprep.subr.mxu0 0.0
    %278 = vmatpush1.msra.mxu0 0.0
    %279 = vmatprep.subr.mxu0 0.0
    %280 = vmatpush1.msra.mxu0 0.0
    %281 = vmatprep.subr.mxu0 0.0
    %282 = vmatpush1.msra.mxu0 0.0
    %283 = vmatprep.subr.mxu0 0.0
    %284 = vmatpush1.msra.mxu0 0.0
    %285 = vmatprep.subr.mxu0 0.0
    %286 = vmatpush1.msra.mxu0 0.0
    %287 = vmatprep.subr.mxu0 0.0
    %288 = vmatpush1.msra.mxu0 0.0
    %289 = vmatprep.subr.mxu0 0.0
    %290 = vmatpush1.msra.mxu0 0.0
    %291 = vmatprep.subr.mxu0 0.0
    %292 = vmatpush1.msra.mxu0 0.0
    %293 = vmatprep.subr.mxu0 0.0
    %294 = vmatpush1.msra.mxu0 0.0
    %295 = vmatprep.subr.mxu0 0.0
    %296 = vmatpush1.msra.mxu0 0.0
    %297 = vmatprep.subr.mxu0 0.0
    %298 = vmatpush1.msra.mxu0 0.0
    %299 = vmatprep.subr.mxu0 0.0
    %300 = vmatpush1.msra.mxu0 0.0
    %301 = vmatprep.subr.mxu0 0.0
    %302 = vmatpush1.msra.mxu0 0.0
    %303 = vmatprep.subr.mxu0 0.0
    %304 = vmatpush1.msra.mxu0 0.0
    %305 = vmatprep.subr.mxu0 0.0
    %306 = vmatpush1.msra.mxu0 0.0
    %307 = vmatprep.subr.mxu0 0.0
    %308 = vmatpush1.msra.mxu0 0.0
    %309 = vmatprep.subr.mxu0 0.0
    %310 = vmatpush1.msra.mxu0 0.0
    %311 = vmatprep.subr.mxu0 0.0
    %312 = vmatpush1.msra.mxu0 0.0
    %313 = vmatprep.subr.mxu0 0.0
    %314 = vmatpush1.msra.mxu0 0.0
    %315 = vmatprep.subr.mxu0 0.0
    %316 = vmatpush1.msra.mxu0 0.0
    %317 = vmatprep.subr.mxu0 0.0
    %318 = vmatpush1.msra.mxu0 0.0
    %319 = vmatprep.subr.mxu0 0.0
    %320 = vmatpush1.msra.mxu0 0.0
    %321 = vmatprep.subr.mxu0 0.0
    %322 = vmatpush1.msra.mxu0 0.0
    %323 = vmatprep.mubr.f32.mxu0 0.0
    %324 = vmatmul.mubr.f32.gmra.mrb[0].mxu0 %v254
    %v325 = vpop.f32.mrb[0].mxu0
    %v326 = vadd.f32 0.0, %v325
    %v327 = vpop.f32.mrb[0].mxu0
    %328 = vmatprep.mubr.f32.mxu0 0.0
    %329 = vmatmul.mubr.f32.gmra.mrb[0].mxu0 %v257
    %v330 = vpop.f32.mrb[0].mxu0
    %v331 = vadd.f32 0.0, %v330
    %v332 = vpop.f32.mrb[0].mxu0
    %333 = vdwg.mxu0
    %v335 = vsel %vm73, %v248, 0
    %v338 = vsel %vm73, %v249, 0
    %340 = vmatprep.subr.mxu0 0.0
    %341 = vmatpush1.msra.mxu0 %v59
    %342 = vmatprep.subr.mxu0 0.0
    %343 = vmatpush1.msra.mxu0 %v60
    %344 = vmatprep.subr.mxu0 0.0
    %345 = vmatpush1.msra.mxu0 %v61
    %346 = vmatprep.subr.mxu0 0.0
    %347 = vmatpush1.msra.mxu0 %v62
    %348 = vmatprep.subr.mxu0 0.0
    %349 = vmatpush1.msra.mxu0 0.0
    %350 = vmatprep.subr.mxu0 0.0
    %351 = vmatpush1.msra.mxu0 0.0
    %352 = vmatprep.subr.mxu0 0.0
    %353 = vmatpush1.msra.mxu0 0.0
    %354 = vmatprep.subr.mxu0 0.0
    %355 = vmatpush1.msra.mxu0 0.0
    %356 = vmatprep.subr.mxu0 0.0
    %357 = vmatpush1.msra.mxu0 0.0
    %358 = vmatprep.subr.mxu0 0.0
    %359 = vmatpush1.msra.mxu0 0.0
    %360 = vmatprep.subr.mxu0 0.0
    %361 = vmatpush1.msra.mxu0 0.0
    %362 = vmatprep.subr.mxu0 0.0
    %363 = vmatpush1.msra.mxu0 0.0
    %364 = vmatprep.subr.mxu0 0.0
    %365 = vmatpush1.msra.mxu0 0.0
    %366 = vmatprep.subr.mxu0 0.0
    %367 = vmatpush1.msra.mxu0 0.0
    %368 = vmatprep.subr.mxu0 0.0
    %369 = vmatpush1.msra.mxu0 0.0
    %370 = vmatprep.subr.mxu0 0.0
    %371 = vmatpush1.msra.mxu0 0.0
    %372 = vmatprep.subr.mxu0 0.0
    %373 = vmatpush1.msra.mxu0 0.0
    %374 = vmatprep.subr.mxu0 0.0
    %375 = vmatpush1.msra.mxu0 0.0
    %376 = vmatprep.subr.mxu0 0.0
    %377 = vmatpush1.msra.mxu0 0.0
    %378 = vmatprep.subr.mxu0 0.0
    %379 = vmatpush1.msra.mxu0 0.0
    %380 = vmatprep.subr.mxu0 0.0
    %381 = vmatpush1.msra.mxu0 0.0
    %382 = vmatprep.subr.mxu0 0.0
    %383 = vmatpush1.msra.mxu0 0.0
    %384 = vmatprep.subr.mxu0 0.0
    %385 = vmatpush1.msra.mxu0 0.0
    %386 = vmatprep.subr.mxu0 0.0
    %387 = vmatpush1.msra.mxu0 0.0
    %388 = vmatprep.subr.mxu0 0.0
    %389 = vmatpush1.msra.mxu0 0.0
    %390 = vmatprep.subr.mxu0 0.0
    %391 = vmatpush1.msra.mxu0 0.0
    %392 = vmatprep.subr.mxu0 0.0
    %393 = vmatpush1.msra.mxu0 0.0
    %394 = vmatprep.subr.mxu0 0.0
    %395 = vmatpush1.msra.mxu0 0.0
    %396 = vmatprep.subr.mxu0 0.0
    %397 = vmatpush1.msra.mxu0 0.0
    %398 = vmatprep.subr.mxu0 0.0
    %399 = vmatpush1.msra.mxu0 0.0
    %400 = vmatprep.subr.mxu0 0.0
    %401 = vmatpush1.msra.mxu0 0.0
    %402 = vmatprep.subr.mxu0 0.0
    %403 = vmatpush1.msra.mxu0 0.0
    %404 = vmatprep.mubr.f32.mxu0 0.0
    %405 = vmatmul.mubr.f32.gmra.mrb[0].mxu0 %v335
    %v406 = vpop.f32.mrb[0].mxu0
    %v407 = vadd.f32 %v326, %v406
    %v408 = vpop.f32.mrb[0].mxu0
    %409 = vmatprep.mubr.f32.mxu0 0.0
    %410 = vmatmul.mubr.f32.gmra.mrb[0].mxu0 %v338
    %v411 = vpop.f32.mrb[0].mxu0
    %v412 = vadd.f32 %v331, %v411
    %v413 = vpop.f32.mrb[0].mxu0
    %414 = vdwg.mxu0
    %v415 = vadd.f32 %v407, %v240
    %v416 = vadd.f32 %v412, %v240
    %v417 = vmax.f32 %v415, 0.0
    %v418 = vmax.f32 %v416, 0.0
    %s419 = scalar_lea.vmem [#allocation8], 16
    %420 = vst [vmem:[%s419] sm:$0xff] %v417
    %421 = vst [vmem:[%s419 + $0x8] sm:$0xff] %v418
    %v422 = vld [vmem:[%s250] sm:$0xff]
    %v423 = vld [vmem:[%s250 + $0x8] sm:$0xff]
    %s424 = scalar_lea.vmem [#allocation2], 48
    %v425 = vld [vmem:[%s424] sm:$0xff]
    %v426 = vld [vmem:[%s424 + $0x8] sm:$0xff]
    %v428 = vsel %vm73, %v425, 0
    %v431 = vsel %vm73, %v426, 0
    %433 = vmatprep.subr.mxu0 0.0
    %434 = vmatpush1.msra.mxu0 %v63
    %435 = vmatprep.subr.mxu0 0.0
    %436 = vmatpush1.msra.mxu0 %v64
    %437 = vmatprep.subr.mxu0 0.0
    %438 = vmatpush1.msra.mxu0 %v65
    %439 = vmatprep.subr.mxu0 0.0
    %440 = vmatpush1.msra.mxu0 %v66
    %441 = vmatprep.subr.mxu0 0.0
    %442 = vmatpush1.msra.mxu0 0.0
    %443 = vmatprep.subr.mxu0 0.0
    %444 = vmatpush1.msra.mxu0 0.0
    %445 = vmatprep.subr.mxu0 0.0
    %446 = vmatpush1.msra.mxu0 0.0
    %447 = vmatprep.subr.mxu0 0.0
    %448 = vmatpush1.msra.mxu0 0.0
    %449 = vmatprep.subr.mxu0 0.0
    %450 = vmatpush1.msra.mxu0 0.0
    %451 = vmatprep.subr.mxu0 0.0
    %452 = vmatpush1.msra.mxu0 0.0
    %453 = vmatprep.subr.mxu0 0.0
    %454 = vmatpush1.msra.mxu0 0.0
    %455 = vmatprep.subr.mxu0 0.0
    %456 = vmatpush1.msra.mxu0 0.0
    %457 = vmatprep.subr.mxu0 0.0
    %458 = vmatpush1.msra.mxu0 0.0
    %459 = vmatprep.subr.mxu0 0.0
    %460 = vmatpush1.msra.mxu0 0.0
    %461 = vmatprep.subr.mxu0 0.0
    %462 = vmatpush1.msra.mxu0 0.0
    %463 = vmatprep.subr.mxu0 0.0
    %464 = vmatpush1.msra.mxu0 0.0
    %465 = vmatprep.subr.mxu0 0.0
    %466 = vmatpush1.msra.mxu0 0.0
    %467 = vmatprep.subr.mxu0 0.0
    %468 = vmatpush1.msra.mxu0 0.0
    %469 = vmatprep.subr.mxu0 0.0
    %470 = vmatpush1.msra.mxu0 0.0
    %471 = vmatprep.subr.mxu0 0.0
    %472 = vmatpush1.msra.mxu0 0.0
    %473 = vmatprep.subr.mxu0 0.0
    %474 = vmatpush1.msra.mxu0 0.0
    %475 = vmatprep.subr.mxu0 0.0
    %476 = vmatpush1.msra.mxu0 0.0
    %477 = vmatprep.subr.mxu0 0.0
    %478 = vmatpush1.msra.mxu0 0.0
    %479 = vmatprep.subr.mxu0 0.0
    %480 = vmatpush1.msra.mxu0 0.0
    %481 = vmatprep.subr.mxu0 0.0
    %482 = vmatpush1.msra.mxu0 0.0
    %483 = vmatprep.subr.mxu0 0.0
    %484 = vmatpush1.msra.mxu0 0.0
    %485 = vmatprep.subr.mxu0 0.0
    %486 = vmatpush1.msra.mxu0 0.0
    %487 = vmatprep.subr.mxu0 0.0
    %488 = vmatpush1.msra.mxu0 0.0
    %489 = vmatprep.subr.mxu0 0.0
    %490 = vmatpush1.msra.mxu0 0.0
    %491 = vmatprep.subr.mxu0 0.0
    %492 = vmatpush1.msra.mxu0 0.0
    %493 = vmatprep.subr.mxu0 0.0
    %494 = vmatpush1.msra.mxu0 0.0
    %495 = vmatprep.subr.mxu0 0.0
    %496 = vmatpush1.msra.mxu0 0.0
    %497 = vmatprep.mubr.f32.mxu0 0.0
    %498 = vmatmul.mubr.f32.gmra.mrb[0].mxu0 %v428
    %v499 = vpop.f32.mrb[0].mxu0
    %v500 = vadd.f32 0.0, %v499
    %v501 = vpop.f32.mrb[0].mxu0
    %502 = vmatprep.mubr.f32.mxu0 0.0
    %503 = vmatmul.mubr.f32.gmra.mrb[0].mxu0 %v431
    %v504 = vpop.f32.mrb[0].mxu0
    %v505 = vadd.f32 0.0, %v504
    %v506 = vpop.f32.mrb[0].mxu0
    %507 = vdwg.mxu0
    %v509 = vsel %vm73, %v422, 0
    %v512 = vsel %vm73, %v423, 0
    %514 = vmatprep.subr.mxu0 0.0
    %515 = vmatpush1.msra.mxu0 %v59
    %516 = vmatprep.subr.mxu0 0.0
    %517 = vmatpush1.msra.mxu0 %v60
    %518 = vmatprep.subr.mxu0 0.0
    %519 = vmatpush1.msra.mxu0 %v61
    %520 = vmatprep.subr.mxu0 0.0
    %521 = vmatpush1.msra.mxu0 %v62
    %522 = vmatprep.subr.mxu0 0.0
    %523 = vmatpush1.msra.mxu0 0.0
    %524 = vmatprep.subr.mxu0 0.0
    %525 = vmatpush1.msra.mxu0 0.0
    %526 = vmatprep.subr.mxu0 0.0
    %527 = vmatpush1.msra.mxu0 0.0
    %528 = vmatprep.subr.mxu0 0.0
    %529 = vmatpush1.msra.mxu0 0.0
    %530 = vmatprep.subr.mxu0 0.0
    %531 = vmatpush1.msra.mxu0 0.0
    %532 = vmatprep.subr.mxu0 0.0
    %533 = vmatpush1.msra.mxu0 0.0
    %534 = vmatprep.subr.mxu0 0.0
    %535 = vmatpush1.msra.mxu0 0.0
    %536 = vmatprep.subr.mxu0 0.0
    %537 = vmatpush1.msra.mxu0 0.0
    %538 = vmatprep.subr.mxu0 0.0
    %539 = vmatpush1.msra.mxu0 0.0
    %540 = vmatprep.subr.mxu0 0.0
    %541 = vmatpush1.msra.mxu0 0.0
    %542 = vmatprep.subr.mxu0 0.0
    %543 = vmatpush1.msra.mxu0 0.0
    %544 = vmatprep.subr.mxu0 0.0
    %545 = vmatpush1.msra.mxu0 0.0
    %546 = vmatprep.subr.mxu0 0.0
    %547 = vmatpush1.msra.mxu0 0.0
    %548 = vmatprep.subr.mxu0 0.0
    %549 = vmatpush1.msra.mxu0 0.0
    %550 = vmatprep.subr.mxu0 0.0
    %551 = vmatpush1.msra.mxu0 0.0
    %552 = vmatprep.subr.mxu0 0.0
    %553 = vmatpush1.msra.mxu0 0.0
    %554 = vmatprep.subr.mxu0 0.0
    %555 = vmatpush1.msra.mxu0 0.0
    %556 = vmatprep.subr.mxu0 0.0
    %557 = vmatpush1.msra.mxu0 0.0
    %558 = vmatprep.subr.mxu0 0.0
    %559 = vmatpush1.msra.mxu0 0.0
    %560 = vmatprep.subr.mxu0 0.0
    %561 = vmatpush1.msra.mxu0 0.0
    %562 = vmatprep.subr.mxu0 0.0
    %563 = vmatpush1.msra.mxu0 0.0
    %564 = vmatprep.subr.mxu0 0.0
    %565 = vmatpush1.msra.mxu0 0.0
    %566 = vmatprep.subr.mxu0 0.0
    %567 = vmatpush1.msra.mxu0 0.0
    %568 = vmatprep.subr.mxu0 0.0
    %569 = vmatpush1.msra.mxu0 0.0
    %570 = vmatprep.subr.mxu0 0.0
    %571 = vmatpush1.msra.mxu0 0.0
    %572 = vmatprep.subr.mxu0 0.0
    %573 = vmatpush1.msra.mxu0 0.0
    %574 = vmatprep.subr.mxu0 0.0
    %575 = vmatpush1.msra.mxu0 0.0
    %576 = vmatprep.subr.mxu0 0.0
    %577 = vmatpush1.msra.mxu0 0.0
    %578 = vmatprep.mubr.f32.mxu0 0.0
    %579 = vmatmul.mubr.f32.gmra.mrb[0].mxu0 %v509
    %v580 = vpop.f32.mrb[0].mxu0
    %v581 = vadd.f32 %v500, %v580
    %v582 = vpop.f32.mrb[0].mxu0
    %583 = vmatprep.mubr.f32.mxu0 0.0
    %584 = vmatmul.mubr.f32.gmra.mrb[0].mxu0 %v512
    %v585 = vpop.f32.mrb[0].mxu0
    %v586 = vadd.f32 %v505, %v585
    %v587 = vpop.f32.mrb[0].mxu0
    %588 = vdwg.mxu0
    %v589 = vadd.f32 %v581, %v240
    %v590 = vadd.f32 %v586, %v240
    %v591 = vmax.f32 %v589, 0.0
    %v592 = vmax.f32 %v590, 0.0
    %s593 = scalar_lea.vmem [#allocation8], 32
    %594 = vst [vmem:[%s593] sm:$0xff] %v591
    %595 = vst [vmem:[%s593 + $0x8] sm:$0xff] %v592
    %v596 = vld [vmem:[%s424] sm:$0xff]
    %v597 = vld [vmem:[%s424 + $0x8] sm:$0xff]
    %s598 = scalar_lea.vmem [#allocation2], 64
    %v599 = vld [vmem:[%s598] sm:$0xff]
    %v600 = vld [vmem:[%s598 + $0x8] sm:$0xff]
    %v602 = vsel %vm73, %v599, 0
    %v605 = vsel %vm73, %v600, 0
    %607 = vmatprep.subr.mxu0 0.0
    %608 = vmatpush1.msra.mxu0 %v63
    %609 = vmatprep.subr.mxu0 0.0
    %610 = vmatpush1.msra.mxu0 %v64
    %611 = vmatprep.subr.mxu0 0.0
    %612 = vmatpush1.msra.mxu0 %v65
    %613 = vmatprep.subr.mxu0 0.0
    %614 = vmatpush1.msra.mxu0 %v66
    %615 = vmatprep.subr.mxu0 0.0
    %616 = vmatpush1.msra.mxu0 0.0
    %617 = vmatprep.subr.mxu0 0.0
    %618 = vmatpush1.msra.mxu0 0.0
    %619 = vmatprep.subr.mxu0 0.0
    %620 = vmatpush1.msra.mxu0 0.0
    %621 = vmatprep.subr.mxu0 0.0
    %622 = vmatpush1.msra.mxu0 0.0
    %623 = vmatprep.subr.mxu0 0.0
    %624 = vmatpush1.msra.mxu0 0.0
    %625 = vmatprep.subr.mxu0 0.0
    %626 = vmatpush1.msra.mxu0 0.0
    %627 = vmatprep.subr.mxu0 0.0
    %628 = vmatpush1.msra.mxu0 0.0
    %629 = vmatprep.subr.mxu0 0.0
    %630 = vmatpush1.msra.mxu0 0.0
    %631 = vmatprep.subr.mxu0 0.0
    %632 = vmatpush1.msra.mxu0 0.0
    %633 = vmatprep.subr.mxu0 0.0
    %634 = vmatpush1.msra.mxu0 0.0
    %635 = vmatprep.subr.mxu0 0.0
    %636 = vmatpush1.msra.mxu0 0.0
    %637 = vmatprep.subr.mxu0 0.0
    %638 = vmatpush1.msra.mxu0 0.0
    %639 = vmatprep.subr.mxu0 0.0
    %640 = vmatpush1.msra.mxu0 0.0
    %641 = vmatprep.subr.mxu0 0.0
    %642 = vmatpush1.msra.mxu0 0.0
    %643 = vmatprep.subr.mxu0 0.0
    %644 = vmatpush1.msra.mxu0 0.0
    %645 = vmatprep.subr.mxu0 0.0
    %646 = vmatpush1.msra.mxu0 0.0
    %647 = vmatprep.subr.mxu0 0.0
    %648 = vmatpush1.msra.mxu0 0.0
    %649 = vmatprep.subr.mxu0 0.0
    %650 = vmatpush1.msra.mxu0 0.0
    %651 = vmatprep.subr.mxu0 0.0
    %652 = vmatpush1.msra.mxu0 0.0
    %653 = vmatprep.subr.mxu0 0.0
    %654 = vmatpush1.msra.mxu0 0.0
    %655 = vmatprep.subr.mxu0 0.0
    %656 = vmatpush1.msra.mxu0 0.0
    %657 = vmatprep.subr.mxu0 0.0
    %658 = vmatpush1.msra.mxu0 0.0
    %659 = vmatprep.subr.mxu0 0.0
    %660 = vmatpush1.msra.mxu0 0.0
    %661 = vmatprep.subr.mxu0 0.0
    %662 = vmatpush1.msra.mxu0 0.0
    %663 = vmatprep.subr.mxu0 0.0
    %664 = vmatpush1.msra.mxu0 0.0
    %665 = vmatprep.subr.mxu0 0.0
    %666 = vmatpush1.msra.mxu0 0.0
    %667 = vmatprep.subr.mxu0 0.0
    %668 = vmatpush1.msra.mxu0 0.0
    %669 = vmatprep.subr.mxu0 0.0
    %670 = vmatpush1.msra.mxu0 0.0
    %671 = vmatprep.mubr.f32.mxu0 0.0
    %672 = vmatmul.mubr.f32.gmra.mrb[0].mxu0 %v602
    %v673 = vpop.f32.mrb[0].mxu0
    %v674 = vadd.f32 0.0, %v673
    %v675 = vpop.f32.mrb[0].mxu0
    %676 = vmatprep.mubr.f32.mxu0 0.0
    %677 = vmatmul.mubr.f32.gmra.mrb[0].mxu0 %v605
    %v678 = vpop.f32.mrb[0].mxu0
    %v679 = vadd.f32 0.0, %v678
    %v680 = vpop.f32.mrb[0].mxu0
    %681 = vdwg.mxu0
    %v683 = vsel %vm73, %v596, 0
    %v686 = vsel %vm73, %v597, 0
    %688 = vmatprep.subr.mxu0 0.0
    %689 = vmatpush1.msra.mxu0 %v59
    %690 = vmatprep.subr.mxu0 0.0
    %691 = vmatpush1.msra.mxu0 %v60
    %692 = vmatprep.subr.mxu0 0.0
    %693 = vmatpush1.msra.mxu0 %v61
    %694 = vmatprep.subr.mxu0 0.0
    %695 = vmatpush1.msra.mxu0 %v62
    %696 = vmatprep.subr.mxu0 0.0
    %697 = vmatpush1.msra.mxu0 0.0
    %698 = vmatprep.subr.mxu0 0.0
    %699 = vmatpush1.msra.mxu0 0.0
    %700 = vmatprep.subr.mxu0 0.0
    %701 = vmatpush1.msra.mxu0 0.0
    %702 = vmatprep.subr.mxu0 0.0
    %703 = vmatpush1.msra.mxu0 0.0
    %704 = vmatprep.subr.mxu0 0.0
    %705 = vmatpush1.msra.mxu0 0.0
    %706 = vmatprep.subr.mxu0 0.0
    %707 = vmatpush1.msra.mxu0 0.0
    %708 = vmatprep.subr.mxu0 0.0
    %709 = vmatpush1.msra.mxu0 0.0
    %710 = vmatprep.subr.mxu0 0.0
    %711 = vmatpush1.msra.mxu0 0.0
    %712 = vmatprep.subr.mxu0 0.0
    %713 = vmatpush1.msra.mxu0 0.0
    %714 = vmatprep.subr.mxu0 0.0
    %715 = vmatpush1.msra.mxu0 0.0
    %716 = vmatprep.subr.mxu0 0.0
    %717 = vmatpush1.msra.mxu0 0.0
    %718 = vmatprep.subr.mxu0 0.0
    %719 = vmatpush1.msra.mxu0 0.0
    %720 = vmatprep.subr.mxu0 0.0
    %721 = vmatpush1.msra.mxu0 0.0
    %722 = vmatprep.subr.mxu0 0.0
    %723 = vmatpush1.msra.mxu0 0.0
    %724 = vmatprep.subr.mxu0 0.0
    %725 = vmatpush1.msra.mxu0 0.0
    %726 = vmatprep.subr.mxu0 0.0
    %727 = vmatpush1.msra.mxu0 0.0
    %728 = vmatprep.subr.mxu0 0.0
    %729 = vmatpush1.msra.mxu0 0.0
    %730 = vmatprep.subr.mxu0 0.0
    %731 = vmatpush1.msra.mxu0 0.0
    %732 = vmatprep.subr.mxu0 0.0
    %733 = vmatpush1.msra.mxu0 0.0
    %734 = vmatprep.subr.mxu0 0.0
    %735 = vmatpush1.msra.mxu0 0.0
    %736 = vmatprep.subr.mxu0 0.0
    %737 = vmatpush1.msra.mxu0 0.0
    %738 = vmatprep.subr.mxu0 0.0
    %739 = vmatpush1.msra.mxu0 0.0
    %740 = vmatprep.subr.mxu0 0.0
    %741 = vmatpush1.msra.mxu0 0.0
    %742 = vmatprep.subr.mxu0 0.0
    %743 = vmatpush1.msra.mxu0 0.0
    %744 = vmatprep.subr.mxu0 0.0
    %745 = vmatpush1.msra.mxu0 0.0
    %746 = vmatprep.subr.mxu0 0.0
    %747 = vmatpush1.msra.mxu0 0.0
    %748 = vmatprep.subr.mxu0 0.0
    %749 = vmatpush1.msra.mxu0 0.0
    %750 = vmatprep.subr.mxu0 0.0
    %751 = vmatpush1.msra.mxu0 0.0
    %752 = vmatprep.mubr.f32.mxu0 0.0
    %753 = vmatmul.mubr.f32.gmra.mrb[0].mxu0 %v683
    %v754 = vpop.f32.mrb[0].mxu0
    %v755 = vadd.f32 %v674, %v754
    %v756 = vpop.f32.mrb[0].mxu0
    %757 = vmatprep.mubr.f32.mxu0 0.0
    %758 = vmatmul.mubr.f32.gmra.mrb[0].mxu0 %v686
    %v759 = vpop.f32.mrb[0].mxu0
    %v760 = vadd.f32 %v679, %v759
    %v761 = vpop.f32.mrb[0].mxu0
    %762 = vdwg.mxu0
    %v763 = vadd.f32 %v755, %v240
    %v764 = vadd.f32 %v760, %v240
    %v765 = vmax.f32 %v763, 0.0
    %v766 = vmax.f32 %v764, 0.0
    %s767 = scalar_lea.vmem [#allocation8], 48
    %768 = vst [vmem:[%s767] sm:$0xff] %v765
    %769 = vst [vmem:[%s767 + $0x8] sm:$0xff] %v766
    // Predicated region
    $region30: #{tpu_custom_call.1} parent=1 // pred_check
      _
    $region31: #{tpu_custom_call.1} parent=1 // pred_check_branch
      %771 = sbr.rel (0) target = $region33
    $region32: #{tpu_custom_call.1} parent=1 // pred_region
      %s773 = ssub.s32 1024, 1024
      %774 = vsyncadd [#allocation4], %s773
      %s775 = sshll.u32 [#allocation8], 4
      %s776 = int_to_ptr.vmem [resolvable:$true] %s775
      %781 = dma.vmem_to_hbm [thread:$0]  %s776, 1024, %s4, [#allocation4], 128, 128, 8
    $region33: #{tpu_custom_call.1} parent=1 // pred_fallthru
      _
    // Predicated region
    $region34: #{tpu_custom_call.1} parent=1 // pred_check
      _
    $region35: #{tpu_custom_call.1} parent=1 // pred_check_branch
      %783 = sbr.rel (0) target = $region37
    $region36: #{tpu_custom_call.1} parent=1 // pred_region
      %784 = dma.done [#allocation4], 1024
    $region37: #{tpu_custom_call.1} parent=1 // pred_fallthru
      _
    %785 = vsyncpa [#allocation3], 1
    %786 = vsyncpa [#allocation6], 1
    %787 = vsyncpa [#allocation4], 1

</llo_original>
